<compile_context>
chip_gen: v6e
topology: v6e:2x2x1
jax: 0.10.0
libtpu: 0.0.40
codegen_flags: <defaults>
</compile_context>

<pallas_src>
import functools

import jax
import jax.numpy as jnp
from jax.experimental import pallas as pl
from jax.experimental.pallas import tpu as pltpu


_MXU_DTYPE = jnp.bfloat16            # MXU operand dtype (accumulation is f32)
_MAX_ROWS = 512                      # 512-row-class tiles ~85% of HBM roofline


def _vmem_limit_bytes():
    """Generation-aware scoped-VMEM budget (v5e/v6e: 128 MiB, v7x: 64 MiB)."""
    try:
        cap = int(pltpu.get_tpu_info().vmem_capacity_bytes)
    except Exception:
        cap = 64 * 1024 * 1024
    return max(32 * 1024 * 1024, min((cap * 3) // 4, 96 * 1024 * 1024))


_VMEM_LIMIT = _vmem_limit_bytes()


def _cparams():
    return pltpu.CompilerParams(
        dimension_semantics=("parallel", "parallel"),
        vmem_limit_bytes=_VMEM_LIMIT)


def _row_tile(n, per_row_bytes, fixed_bytes=0, align=16):
    """Largest row tile that fits the VMEM budget, divides n and respects sublane
    alignment; degrades to a small aligned divisor instead of silently blowing
    the budget (guards the previous fallback-to-full-n behaviour)."""
    budget = int(0.6 * _VMEM_LIMIT) - fixed_bytes
    cap = max(align, min(_MAX_ROWS, budget // max(1, per_row_bytes)))
    if n <= cap:
        return n
    t = (cap // align) * align
    while t >= align:
        if n % t == 0:
            return t
        t -= align
    t = align
    while t < n:
        if n % t == 0:
            return t
        t += align
    return n


# ----------------------------- Pallas kernels -----------------------------


def _coarse_scores_kernel(q_ref, kt_ref, a_ref, *, scale):
    # q: [TL, D] bf16, kt: [D, S] bf16 -> A = softmax_S(scale * q @ kt), stored bf16.
    s = jnp.dot(q_ref[...], kt_ref[...], preferred_element_type=jnp.float32) * scale
    m = jnp.max(s, axis=-1, keepdims=True)
    e = jnp.exp(s - m)
    r = pl.reciprocal(jnp.sum(e, axis=-1, keepdims=True))   # exact (EUP slot)
    a_ref[...] = (e * r).astype(a_ref.dtype)


def coarse_scores(q, kt, scale):
    # q: [BH, L, D] bf16, kt: [BH, D, S] bf16 -> A: [BH, L, S] bf16
    BH, L, D = q.shape
    S = kt.shape[-1]
    tl = _row_tile(L, per_row_bytes=4 * D + 24 * S, fixed_bytes=4 * D * S)
    return pl.pallas_call(
        functools.partial(_coarse_scores_kernel, scale=scale),
        out_shape=jax.ShapeDtypeStruct((BH, L, S), jnp.bfloat16),
        grid=(BH, L // tl),
        in_specs=[
            pl.BlockSpec((None, tl, D), lambda b, i: (b, i, 0)),
            pl.BlockSpec((None, D, S), lambda b, i: (b, 0, 0)),
        ],
        out_specs=pl.BlockSpec((None, tl, S), lambda b, i: (b, i, 0)),
        compiler_params=_cparams(),
    )(q, kt)


def _masked_agg_kernel(a_ref, idx_ref, v_ref, o_ref, *, topk):
    # message = (A with the top-k columns zeroed) @ V.
    # One OR-accumulated hit mask + a single select (instead of topk where passes).
    a = a_ref[...]                                          # bf16 [R, C]
    idx = idx_ref[...]                                      # int32 [R, topk]
    col = jax.lax.broadcasted_iota(jnp.int32, a.shape, 1)
    hit = col == idx[:, 0:1]
    for t in range(1, topk):
        hit = jnp.logical_or(hit, col == idx[:, t:t + 1])
    a = jnp.where(hit, 0.0, a)
    o_ref[...] = jnp.dot(a, v_ref[...],
                         preferred_element_type=jnp.float32).astype(o_ref.dtype)


def masked_aggregate(A, idx, v):
    # A: [BH, R, C] bf16, idx: [BH, R, topk] int32, v: [BH, C, D] bf16 -> [BH, R, D] f32
    BH, R, C = A.shape
    D = v.shape[-1]
    topk = idx.shape[-1]
    tr = _row_tile(R, per_row_bytes=12 * C + 8 * D + 4 * topk,
                   fixed_bytes=4 * C * D)
    return pl.pallas_call(
        functools.partial(_masked_agg_kernel, topk=topk),
        out_shape=jax.ShapeDtypeStruct((BH, R, D), jnp.float32),
        grid=(BH, R // tr),
        in_specs=[
            pl.BlockSpec((None, tr, C), lambda b, i: (b, i, 0)),
            pl.BlockSpec((None, tr, topk), lambda b, i: (b, i, 0)),
            pl.BlockSpec((None, C, D), lambda b, i: (b, 0, 0)),
        ],
        out_specs=pl.BlockSpec((None, tr, D), lambda b, i: (b, i, 0)),
        compiler_params=_cparams(),
    )(A, idx, v)


def _fine_weighted_children(q_ref, kct_ref, pidx_ref, psc_ref, *, scale, kp, sp):
    """Shared fine-level body.

    Scores q against ALL keys in child-major layout (column = f*Sp + parent),
    applies the per-parent softmax over the 4 children, and weights by the
    previous level's top-k scores scattered onto their parent columns.  The
    scatter runs at parent resolution (tr/4 rows, the 4 child rows of a parent
    share pidx/psc) and is expanded to child rows with an exact one-hot bf16
    MXU matmul.  Returns the 4 per-child exp blocks and the shared rw weight.
    """
    q = q_ref[...]                                          # [tr, D] bf16
    tr = q.shape[0]
    tp = pidx_ref.shape[0]                                  # tr // 4 parent rows

    # Per key-child raw scores: 4 separate MXU dots against *ref* slices of kct.
    s = [jnp.dot(q, kct_ref[:, f * sp:(f + 1) * sp],
                 preferred_element_type=jnp.float32) * scale for f in range(4)]
    m = jnp.maximum(jnp.maximum(s[0], s[1]), jnp.maximum(s[2], s[3]))
    e = [jnp.exp(sf - m) for sf in s]
    denom = e[0] + e[1] + e[2] + e[3]

    # Parent weight at parent resolution (top-k indices are unique -> no double
    # counting), built from int32 indices with broadcasted_iota compares.
    pidx = pidx_ref[...]                                    # [tp, kp] int32
    psc = psc_ref[...]                                      # [tp, kp] f32
    piota = jax.lax.broadcasted_iota(jnp.int32, (tp, sp), 1)
    wp = jnp.zeros((tp, sp), jnp.float32)
    for k in range(kp):
        wp = wp + jnp.where(piota == pidx[:, k:k + 1], psc[:, k:k + 1], 0.0)

    # Expand [tp, Sp] -> [tr, Sp] (each parent row repeated 4x) via a one-hot
    # matmul on the MXU (bf16 cast is lossless: wp values come from bf16 scores).
    child_parent = jax.lax.broadcasted_iota(jnp.int32, (tr, tp), 0) // 4
    parent = jax.lax.broadcasted_iota(jnp.int32, (tr, tp), 1)
    expand = jnp.where(child_parent == parent, 1.0, 0.0).astype(_MXU_DTYPE)
    w = jnp.dot(expand, wp.astype(_MXU_DTYPE), preferred_element_type=jnp.float32)

    rw = pl.reciprocal(denom) * w                           # exact reciprocal
    return e, rw


def _fine_scores_kernel(q_ref, kct_ref, pidx_ref, psc_ref, a_ref, *, scale, kp, sp):
    e, rw = _fine_weighted_children(q_ref, kct_ref, pidx_ref, psc_ref,
                                    scale=scale, kp=kp, sp=sp)
    for f in range(4):
        a_ref[:, f * sp:(f + 1) * sp] = (e[f] * rw).astype(a_ref.dtype)


def fine_scores(q, kct, pidx, psc, scale, kp):
    # q: [BH, R, D] bf16, kct: [BH, D, C] bf16, pidx/psc: [BH, R/4, kp] -> Aw [BH, R, C] bf16
    BH, R, D = q.shape
    C = kct.shape[-1]
    sp = C // 4
    tr = _row_tile(R, per_row_bytes=4 * D + 20 * C, fixed_bytes=4 * D * C, align=32)
    return pl.pallas_call(
        functools.partial(_fine_scores_kernel, scale=scale, kp=kp, sp=sp),
        out_shape=jax.ShapeDtypeStruct((BH, R, C), jnp.bfloat16),
        grid=(BH, R // tr),
        in_specs=[
            pl.BlockSpec((None, tr, D), lambda b, i: (b, i, 0)),
            pl.BlockSpec((None, D, C), lambda b, i: (b, 0, 0)),
            pl.BlockSpec((None, tr // 4, kp), lambda b, i: (b, i, 0)),
            pl.BlockSpec((None, tr // 4, kp), lambda b, i: (b, i, 0)),
        ],
        out_specs=pl.BlockSpec((None, tr, C), lambda b, i: (b, i, 0)),
        compiler_params=_cparams(),
    )(q, kct, pidx, psc)


def _fine_final_kernel(q_ref, kct_ref, vc_ref, pidx_ref, psc_ref, o_ref, *,
                       scale, kp, sp):
    # Fully fused finest level: the weighted scores never leave VMEM.
    e, rw = _fine_weighted_children(q_ref, kct_ref, pidx_ref, psc_ref,
                                    scale=scale, kp=kp, sp=sp)
    acc = jnp.zeros(o_ref.shape, jnp.float32)
    for f in range(4):
        af = (e[f] * rw).astype(_MXU_DTYPE)
        acc = acc + jnp.dot(af, vc_ref[f * sp:(f + 1) * sp, :],
                            preferred_element_type=jnp.float32)
    o_ref[...] = acc.astype(o_ref.dtype)


def fine_final_message(q, kct, vc, pidx, psc, scale, kp):
    # -> message [BH, R, D] f32
    BH, R, D = q.shape
    C = kct.shape[-1]
    sp = C // 4
    tr = _row_tile(R, per_row_bytes=12 * C + 16 * D, fixed_bytes=8 * D * C, align=32)
    return pl.pallas_call(
        functools.partial(_fine_final_kernel, scale=scale, kp=kp, sp=sp),
        out_shape=jax.ShapeDtypeStruct((BH, R, D), jnp.float32),
        grid=(BH, R // tr),
        in_specs=[
            pl.BlockSpec((None, tr, D), lambda b, i: (b, i, 0)),
            pl.BlockSpec((None, D, C), lambda b, i: (b, 0, 0)),
            pl.BlockSpec((None, C, D), lambda b, i: (b, 0, 0)),
            pl.BlockSpec((None, tr // 4, kp), lambda b, i: (b, i, 0)),
            pl.BlockSpec((None, tr // 4, kp), lambda b, i: (b, i, 0)),
        ],
        out_specs=pl.BlockSpec((None, tr, D), lambda b, i: (b, i, 0)),
        compiler_params=_cparams(),
    )(q, kct, vc, pidx, psc)


# ----------------------------- layout helpers -----------------------------
# All helpers emit bf16 so the HBM->VMEM DMAs and the stationary K/V blocks are
# half-width; accumulation / softmax stay in f32 inside the kernels.


def _coarse_qv(x, nhead):
    # [b, c, h, w] -> [b*nh, h*w, d]
    b, c, h, w = x.shape
    d = c // nhead
    x = x.reshape(b, nhead, d, h * w)
    return jnp.transpose(x, (0, 1, 3, 2)).reshape(b * nhead, h * w, d).astype(_MXU_DTYPE)


def _coarse_kt(x, nhead):
    # [b, c, h, w] -> [b*nh, d, h*w]   (pure reshape, no transpose)
    b, c, h, w = x.shape
    d = c // nhead
    return x.reshape(b * nhead, d, h * w).astype(_MXU_DTYPE)


def _fine_q_rows(x, nhead):
    # [b, c, h, w] -> [b*nh, (h/2*w/2)*4, d], row = parent*4 + (t1*2 + t2)
    b, c, h, w = x.shape
    d = c // nhead
    x = x.reshape(b, nhead, d, h // 2, 2, w // 2, 2)
    x = jnp.transpose(x, (0, 1, 3, 5, 4, 6, 2))
    return x.reshape(b * nhead, (h // 2) * (w // 2) * 4, d).astype(_MXU_DTYPE)


def _fine_kt_child_major(x, nhead):
    # [b, c, h, w] -> [b*nh, d, 4*Sp], column = f*Sp + parent, f = 2*t1 + t2
    b, c, h, w = x.shape
    d = c // nhead
    x = x.reshape(b, nhead, d, h // 2, 2, w // 2, 2)
    x = jnp.transpose(x, (0, 1, 2, 4, 6, 3, 5))
    return x.reshape(b * nhead, d, 4 * (h // 2) * (w // 2)).astype(_MXU_DTYPE)


def _fine_v_child_major(x, nhead):
    # [b, c, h, w] -> [b*nh, 4*Sp, d]
    b, c, h, w = x.shape
    d = c // nhead
    x = x.reshape(b, nhead, d, h // 2, 2, w // 2, 2)
    x = jnp.transpose(x, (0, 1, 4, 6, 3, 5, 2))
    return x.reshape(b * nhead, 4 * (h // 2) * (w // 2), d).astype(_MXU_DTYPE)


# --------------------------- QTAttA (JAX/Pallas) ---------------------------


class QTAttA:
    """Multi-head quadtree attention (type A). Forward only, no parameters."""

    def __init__(self, nhead, dim, topks=(32, 32, 32, 32), scale=None,
                 use_dropout=False, attention_dropout=0.1):
        self.use_dropout = use_dropout   # dropout never applied in reference forward
        self.topks = list(topks)
        self.nhead = nhead
        self.dim = dim

    def __call__(self, queries, keys, values, q_mask=None, kv_mask=None):
        nh = self.nhead
        nlev = len(queries)
        bs = queries[0].shape[0]
        rev_q = list(reversed(queries))
        rev_k = list(reversed(keys))
        rev_v = list(reversed(values))

        messages = []            # coarse -> fine, each [B*nh, rows, d] (f32)
        pidx = psc = None
        topk = self.topks[0]

        for i in range(nlev):
            query, key, value = rev_q[i], rev_k[i], rev_v[i]
            _, c, h, w = key.shape
            d = c // nh
            scale = 1.0 / d ** 0.5
            final = (i == nlev - 1)

            if i == 0:
                qb = _coarse_qv(query, nh)             # [BH, L, D] bf16
                ktb = _coarse_kt(key, nh)              # [BH, D, S] bf16
                vb = _coarse_qv(value, nh)             # [BH, S, D] bf16
                A = coarse_scores(qb, ktb, scale)      # [BH, L, S] bf16
                psc_bf, pidx = jax.lax.top_k(A, topk)  # bf16 / int32
                psc = psc_bf.astype(jnp.float32)
                messages.append(masked_aggregate(A, pidx, vb))
            else:
                kp = topk
                topk = self.topks[i]
                sp = (h // 2) * (w // 2)               # key parents at this level
                q2 = _fine_q_rows(query, nh)           # [BH, 4*Sp, D] bf16
                kct = _fine_kt_child_major(key, nh)    # [BH, D, 4*Sp] bf16
                vc = _fine_v_child_major(value, nh)    # [BH, 4*Sp, D] bf16
                pidx = pidx.astype(jnp.int32)          # [BH, Sp, kp] parent-resolution

                if final:
                    messages.append(
                        fine_final_message(q2, kct, vc, pidx, psc, scale, kp))
                else:
                    Aw = fine_scores(q2, kct, pidx, psc, scale, kp)   # bf16 [BH, R, C]
                    # Candidate-restricted top_k (matches the reference selection and
                    # avoids ties with zeroed non-candidate columns).  Candidate
                    # ordering is (k, f) to mirror the reference tie-breaking.
                    BH = Aw.shape[0]
                    Pq = pidx.shape[1]
                    cand = (pidx[..., None] +
                            sp * jnp.arange(4, dtype=jnp.int32)
                            ).reshape(BH, Pq, kp * 4)                 # [BH, Pq, 4*kp]
                    cand_rows = jnp.repeat(cand, 4, axis=1)           # [BH, R, 4*kp]
                    gath = jnp.take_along_axis(Aw, cand_rows, axis=2)
                    ts, sel = jax.lax.top_k(gath, topk)               # bf16 / int32
                    cols = jnp.take_along_axis(cand_rows, sel, axis=2)
                    messages.append(masked_aggregate(Aw, cols, vc))

                    # child-major column -> global row-major index at this level
                    p = cols % sp
                    f = cols // sp
                    gy = 2 * (p // (w // 2)) + f // 2
                    gx = 2 * (p % (w // 2)) + f % 2
                    g = gy * w + gx

                    def _fine_order(t):
                        # 'b (hh ww) (t1 t2) k -> b (hh t1 ww t2) k'
                        last = t.shape[-1]
                        t = t.reshape(bs * nh, h // 2, w // 2, 2, 2, last)
                        t = jnp.transpose(t, (0, 1, 3, 2, 4, 5))
                        return t.reshape(bs * nh, h * w, last)

                    pidx = _fine_order(g)
                    psc = _fine_order(ts.astype(jnp.float32))

        # pyramid combination (stays in [BH, rows, D]; one transpose at the end)
        fm = messages[0]
        for i in range(1, len(messages)):
            Hp = rev_q[i - 1].shape[2]
            BH, Lp, dm = fm.shape
            Wp = Lp // Hp
            m = messages[i].reshape(BH, Lp, 4, dm)
            fm = fm[:, :, None, :] + m
            fm = fm.reshape(BH, Hp, Wp, 2, 2, dm)
            fm = jnp.transpose(fm, (0, 1, 3, 2, 4, 5))
            fm = fm.reshape(BH, Hp * 2 * Wp * 2, dm)

        BH, Lf, dm = fm.shape
        return jnp.transpose(fm.reshape(bs, nh, Lf, dm), (0, 2, 1, 3))


# --------------------------------- demo ---------------------------------

if __name__ == "__main__":
    key0 = jax.random.PRNGKey(0)
    B, nhead, c = 2, 2, 16
    # pyramid ordered finest -> coarsest (module iterates reversed, coarsest first)
    shapes = [(16, 16), (8, 8), (4, 4)]
    ks = jax.random.split(key0, 3 * len(shapes))
    queries, keys_p, values = [], [], []
    for li, (h, w) in enumerate(shapes):
        queries.append(jax.random.normal(ks[3 * li + 0], (B, c, h, w), jnp.float32))
        keys_p.append(jax.random.normal(ks[3 * li + 1], (B, c, h, w), jnp.float32))
        values.append(jax.random.normal(ks[3 * li + 2], (B, c, h, w), jnp.float32))

    attn = QTAttA(nhead=nhead, dim=c // nhead, topks=[4, 4, 4])
    out = attn(queries, keys_p, values)
    out = jax.block_until_ready(out)

    expected = (B, shapes[0][0] * shapes[0][1], nhead, c // nhead)
    assert out.shape == expected, (out.shape, expected)
    assert bool(jnp.all(jnp.isfinite(out)))
    print("KERNEL_OK")
</pallas_src>

<mosaic_0001>
module attributes {stable_mosaic.version = 11 : i64} {
  func.func @_coarse_scores_kernel(%arg0: i32, %arg1: i32, %arg2: memref<1x16x8xbf16, #tpu.memory_space<vmem>>, %arg3: memref<1x8x16xbf16, #tpu.memory_space<vmem>>, %arg4: memref<1x16x16xbf16, #tpu.memory_space<vmem>>) attributes {dimension_semantics = [#tpu.dimension_semantics<parallel>, #tpu.dimension_semantics<parallel>], iteration_bounds = array<i64: 4, 1>, scalar_prefetch = 0 : i64, scratch_operands = 0 : i64, tpu.core_type = #tpu.core_type<tc>, window_params = [{transform_indices = @transform_0, window_bounds = array<i64: 1, 16, 8>}, {transform_indices = @transform_1, window_bounds = array<i64: 1, 8, 16>}, {transform_indices = @transform_2, window_bounds = array<i64: 1, 16, 16>}]} {
    %c0 = arith.constant 0 : index
    %c0_0 = arith.constant 0 : index
    %c0_1 = arith.constant 0 : index
    %0 = vector.load %arg2[%c0, %c0_0, %c0_1] : memref<1x16x8xbf16, #tpu.memory_space<vmem>>, vector<1x16x8xbf16>
    %1 = vector.shape_cast %0 : vector<1x16x8xbf16> to vector<16x8xbf16>
    %c0_2 = arith.constant 0 : index
    %c0_3 = arith.constant 0 : index
    %c0_4 = arith.constant 0 : index
    %2 = vector.load %arg3[%c0_2, %c0_3, %c0_4] : memref<1x8x16xbf16, #tpu.memory_space<vmem>>, vector<1x8x16xbf16>
    %3 = vector.shape_cast %2 : vector<1x8x16xbf16> to vector<8x16xbf16>
    %cst = arith.constant dense<0.000000e+00> : vector<16x16xf32>
    %4 = tpu.matmul %1, %3, %cst {dimension_numbers = #tpu.dot_dimension_numbers<[1], [0], [0], [1], [0, 0, 1, 1], [], []>} : vector<16x8xbf16>, vector<8x16xbf16>, vector<16x16xf32> -> vector<16x16xf32>
    %cst_5 = arith.constant 0.353553385 : f32
    %5 = vector.broadcast %cst_5 : f32 to vector<16x16xf32>
    %6 = arith.mulf %4, %5 : vector<16x16xf32>
    %cst_6 = arith.constant dense<0xFF800000> : vector<16xf32>
    %7 = vector.multi_reduction <maximumf>, %6, %cst_6 [1] : vector<16x16xf32> to vector<16xf32>
    %8 = vector.shape_cast %7 : vector<16xf32> to vector<16x1xf32>
    %9 = vector.broadcast %8 : vector<16x1xf32> to vector<16x16xf32>
    %10 = arith.subf %6, %9 : vector<16x16xf32>
    %11 = math.exp %10 : vector<16x16xf32>
    %cst_7 = arith.constant dense<0.000000e+00> : vector<16xf32>
    %12 = vector.multi_reduction <add>, %11, %cst_7 [1] : vector<16x16xf32> to vector<16xf32>
    %13 = vector.shape_cast %12 : vector<16xf32> to vector<16x1xf32>
    %14 = tpu.reciprocal %13 : vector<16x1xf32> -> vector<16x1xf32>
    %15 = vector.broadcast %14 : vector<16x1xf32> to vector<16x16xf32>
    %16 = arith.mulf %11, %15 : vector<16x16xf32>
    %17 = arith.truncf %16 : vector<16x16xf32> to vector<16x16xbf16>
    %c0_8 = arith.constant 0 : index
    %c0_9 = arith.constant 0 : index
    %c0_10 = arith.constant 0 : index
    %18 = vector.load %arg4[%c0_8, %c0_9, %c0_10] : memref<1x16x16xbf16, #tpu.memory_space<vmem>>, vector<1x16x16xbf16>
    %19 = vector.shape_cast %18 : vector<1x16x16xbf16> to vector<16x16xbf16>
    %20 = vector.shape_cast %17 : vector<16x16xbf16> to vector<1x16x16xbf16>
    tpu.vector_store %arg4[%c0_8, %c0_9, %c0_10], %20 {strides = array<i32>} : memref<1x16x16xbf16, #tpu.memory_space<vmem>>, vector<1x16x16xbf16>,
    return
  }
  func.func @transform_0(%arg0: i32, %arg1: i32) -> (i32, i32, i32) {
    %c0_i32 = arith.constant 0 : i32
    %c0_i32_0 = arith.constant 0 : i32
    return %arg0, %arg1, %c0_i32 : i32, i32, i32
  }
  func.func @transform_1(%arg0: i32, %arg1: i32) -> (i32, i32, i32) {
    %c0_i32 = arith.constant 0 : i32
    %c0_i32_0 = arith.constant 0 : i32
    %c0_i32_1 = arith.constant 0 : i32
    return %arg0, %c0_i32, %c0_i32_0 : i32, i32, i32
  }
  func.func @transform_2(%arg0: i32, %arg1: i32) -> (i32, i32, i32) {
    %c0_i32 = arith.constant 0 : i32
    %c0_i32_0 = arith.constant 0 : i32
    return %arg0, %arg1, %c0_i32 : i32, i32, i32
  }
}

</mosaic_0001>

<llo_original>
// kernel: tpu_custom_call.1
$region0: #{tpu_custom_call.1}
  #allocation0 [shape = 'u32[]', space=smem, size = 0x4, offset = 0x4, fixed_abs, tag = 'smem constant byte address 0x4 - core index']
  #allocation1 [shape = 'u32[144,128]{1,0:T(1,128)}', space=vmem, size = 0x12000, scoped, tag = 'internal scratch']
  %s0 = inlined_call_operand.vmem [shape: bf16[4,16,8], index: 0, kind: input, shape index: {}]
  %s1 = inlined_call_operand.vmem [shape: bf16[4,8,16], index: 1, kind: input, shape index: {}]
  %s2 = inlined_call_operand.hbm [shape: bf16[4,16,16], index: 2, kind: output, shape index: {}]
  %s3 = sld [smem:[#allocation0]]
  $region41: #{tpu_custom_call.1} parent=0
    _
  %s5 = ssub.s32 1, %s3
  %s6 = scalar_select 0, %s5, %s3
  $region1: #{tpu_custom_call.1} parent=0
    #allocation2 [shape = 'u8[8192]{0}', space=vmem, size = 0x2000, scoped, tag = 'output window, operand 0']
    #allocation3 [shape = 's32[2]{0}', space=sflag, size = 0x8, scoped, tag = 'scoped memory for tpu_custom_call.1']
    %7 = vsyncpa [#allocation3], 0
    %s8 = scalar_lea.sflag [#allocation3], 1
    %9 = vsyncpa %s8, 0
    loop: start=0, step=1, limit=6
    $region2: #{tpu_custom_call.1} parent=1 // loop_pre_header
      _
    $region3: #{tpu_custom_call.1} parent=1 // loop_header
      %s11 = sphi 0, %s15
      %p12 = scmp.ge.s32.totalorder %s11, 6
      %s18 = sphi 0, %s30
      %s19 = sphi 0, %s26
      %s20 = sphi 0, %s18
      %s21 = sphi 0, %s19
      %s22 = sphi 0, %s20
      %s23 = sphi 0, %s21
      %s35 = sphi 0, %s37
      %s38 = sphi 0, %s35
      %s39 = sphi 0, %s38
      %s55 = sphi 0, %s39
      %s61 = sphi 0, %s63
      %s64 = sphi 0, %s61
      %s65 = sphi 0, %s64
      %s81 = sphi 0, %s65
      %s89 = sphi 0, %s91
      %s92 = sphi 0, %s89
      %s93 = sphi 0, %s92
      %s109 = sphi 0, %s93
    $region4: #{tpu_custom_call.1} parent=1 // loop_header_branch
      %14 = sbr.rel (%p12) target = $region8
    $region5: #{tpu_custom_call.1} parent=1 // loop_body
      %s16 = ssub.s32 %s11, 1
      %s17 = ssub.s32 %s11, 2
      %s24 = sadd.s32 1, %s19
      %p25 = scmp.ge.s32.totalorder %s24, 1
      %s26 = scalar_select %p25, 0, %s24
      %s27 = sadd.s32 1, %s18
      %s28 = scalar_select %p25, %s27, %s18
      %p29 = scmp.ge.s32.totalorder %s28, 4
      %s30 = scalar_select %p29, 0, %s28
      %s31 = ssub.s32 %s18, %s30
      %s32 = ssub.s32 %s19, %s26
      %s33 = sor.u32 %s31, %s32
      %p34 = scmp.eq.s32.totalorder %s33, 0
      %s36 = sadd.s32 %s35, 1
      %s37 = scalar_select %p34, %s35, %s36
      %p40 = pneg %p34
      %p41 = scmp.eq.s32.totalorder %s11, 3
      %p42 = por %p40, %p41
      %p43 = scmp.ne.s32.totalorder %s35, %s38
      %p44 = scmp.eq.s32.totalorder %s11, 0
      %p45 = por %p43, %p44
      %p46 = scmp.ne.s32.totalorder %s35, %s38
      %p47 = scmp.eq.s32.totalorder %s16, 3
      %p48 = por %p46, %p47
      %p49 = scmp.ne.s32.totalorder %s38, %s39
      %p50 = scmp.eq.s32.totalorder %s16, 0
      %p51 = por %p49, %p50
      %p52 = scmp.ne.s32.totalorder %s38, %s39
      %p53 = scmp.eq.s32.totalorder %s17, 3
      %p54 = por %p52, %p53
      %p56 = scmp.ne.s32.totalorder %s39, %s55
      %p57 = scmp.eq.s32.totalorder %s17, 0
      %p58 = por %p56, %p57
      %s59 = ssub.s32 %s18, %s30
      %p60 = scmp.eq.s32.totalorder %s59, 0
      %s62 = sadd.s32 %s61, 1
      %s63 = scalar_select %p60, %s61, %s62
      %p66 = pneg %p60
      %p67 = scmp.eq.s32.totalorder %s11, 3
      %p68 = por %p66, %p67
      %p69 = scmp.ne.s32.totalorder %s61, %s64
      %p70 = scmp.eq.s32.totalorder %s11, 0
      %p71 = por %p69, %p70
      %p72 = scmp.ne.s32.totalorder %s61, %s64
      %p73 = scmp.eq.s32.totalorder %s16, 3
      %p74 = por %p72, %p73
      %p75 = scmp.ne.s32.totalorder %s64, %s65
      %p76 = scmp.eq.s32.totalorder %s16, 0
      %p77 = por %p75, %p76
      %p78 = scmp.ne.s32.totalorder %s64, %s65
      %p79 = scmp.eq.s32.totalorder %s17, 3
      %p80 = por %p78, %p79
      %p82 = scmp.ne.s32.totalorder %s65, %s81
      %p83 = scmp.eq.s32.totalorder %s17, 0
      %p84 = por %p82, %p83
      %s85 = ssub.s32 %s18, %s30
      %s86 = ssub.s32 %s19, %s26
      %s87 = sor.u32 %s85, %s86
      %p88 = scmp.eq.s32.totalorder %s87, 0
      %s90 = sadd.s32 %s89, 1
      %s91 = scalar_select %p88, %s89, %s90
      %p94 = pneg %p88
      %p95 = scmp.eq.s32.totalorder %s11, 3
      %p96 = por %p94, %p95
      %p97 = scmp.ne.s32.totalorder %s89, %s92
      %p98 = scmp.eq.s32.totalorder %s11, 0
      %p99 = por %p97, %p98
      %p100 = scmp.ne.s32.totalorder %s89, %s92
      %p101 = scmp.eq.s32.totalorder %s16, 3
      %p102 = por %p100, %p101
      %p103 = scmp.ne.s32.totalorder %s92, %s93
      %p104 = scmp.eq.s32.totalorder %s16, 0
      %p105 = por %p103, %p104
      %p106 = scmp.ne.s32.totalorder %s92, %s93
      %p107 = scmp.eq.s32.totalorder %s17, 3
      %p108 = por %p106, %p107
      %p110 = scmp.ne.s32.totalorder %s93, %s109
      %p111 = scmp.eq.s32.totalorder %s17, 0
      %p112 = por %p110, %p111
      %p113 = scmp.le.s32.totalorder 1, %s11
      %p114 = scmp.lt.s32.totalorder %s11, 5
      %p115 = pnand %p113, %p114
      %p116 = pneg %p115
      // Predicated region
      $region9: #{tpu_custom_call.1} parent=5 // pred_check
        _
      $region10: #{tpu_custom_call.1} parent=5 // pred_check_branch
        %118 = sbr.rel (%p115) target = $region12
      $region11: #{tpu_custom_call.1} parent=5 // pred_region
        %s119 = ssub.s32 %s11, 1
      $region12: #{tpu_custom_call.1} parent=5 // pred_fallthru
        _
      %p120 = scmp.lt.s32.totalorder %s11, 4
      // Predicated region
      $region13: #{tpu_custom_call.1} parent=5 // pred_check
        %p121 = pneg %p120
      $region14: #{tpu_custom_call.1} parent=5 // pred_check_branch
        %123 = sbr.rel (%p121) target = $region16
      $region15: #{tpu_custom_call.1} parent=5 // pred_region
        // Predicated region
        $region17: #{tpu_custom_call.1} parent=15 // pred_check
          %p124 = pneg %p45
        $region18: #{tpu_custom_call.1} parent=15 // pred_check_branch
          %126 = sbr.rel (%p124) target = $region20
        $region19: #{tpu_custom_call.1} parent=15 // pred_region
          %s127 = smul.u32 2, %s19
          %p128 = scmp.lt.s32.totalorder %s18, 3
          %s129 = scalar_select %p128, %s18, 3
          %p130 = scmp.lt.s32.totalorder %s127, 1
          %s131 = scalar_select %p130, %s127, 1
          %s132 = smul.addr %s129, 2
          %s133 = sadd.s32 %s131, %s132
          %s134 = smul.addr %s133, 4
          %s135 = scalar_lea.vmem %s0, %s134
          %s136 = smul.u32 2, %s19
        $region20: #{tpu_custom_call.1} parent=15 // pred_fallthru
          _
        // Predicated region
        $region21: #{tpu_custom_call.1} parent=15 // pred_check
          %p137 = pneg %p71
        $region22: #{tpu_custom_call.1} parent=15 // pred_check_branch
          %139 = sbr.rel (%p137) target = $region24
        $region23: #{tpu_custom_call.1} parent=15 // pred_region
          %p140 = scmp.lt.s32.totalorder %s18, 3
          %s141 = scalar_select %p140, %s18, 3
          %s142 = smul.addr %s141, 4
          %s143 = scalar_lea.vmem %s1, %s142
        $region24: #{tpu_custom_call.1} parent=15 // pred_fallthru
          _
      $region16: #{tpu_custom_call.1} parent=5 // pred_fallthru
        _
      %p144 = scmp.le.s32.totalorder 1, %s11
      %p145 = scmp.lt.s32.totalorder %s11, 5
      %p146 = pnand %p144, %p145
      %p147 = pneg %p146
      // Predicated region
      $region25: #{tpu_custom_call.1} parent=5 // pred_check
        _
      $region26: #{tpu_custom_call.1} parent=5 // pred_check_branch
        %149 = sbr.rel (%p146) target = $region28
      $region27: #{tpu_custom_call.1} parent=5 // pred_region
        %s150 = ssub.s32 %s11, 1
        %s151 = smul.u32 2, %s21
        %p152 = scmp.lt.s32.totalorder %s20, 3
        %s153 = scalar_select %p152, %s20, 3
        %p154 = scmp.lt.s32.totalorder %s151, 1
        %s155 = scalar_select %p154, %s151, 1
        %s156 = smul.addr %s153, 2
        %s157 = sadd.s32 %s155, %s156
        %s158 = smul.addr %s157, 4
        %s159 = scalar_lea.vmem %s0, %s158
        %p160 = pneg %p51
        %p161 = pneg %p48
        %p162 = scmp.lt.s32.totalorder %s20, 3
        %s163 = scalar_select %p162, %s20, 3
        %s164 = smul.addr %s163, 4
        %s165 = scalar_lea.vmem %s1, %s164
        %p166 = pneg %p77
        %p167 = pneg %p74
        %p168 = pneg %p105
        %p169 = pneg %p102
        %s170 = sand.u32 %s92, 1
        %s171 = scalar_lea.sflag [#allocation3], %s170
        %s172 = sand.u32 %s92, 1
        %s173 = smul.addr %s172, 8
        %s174 = scalar_lea.vmem [#allocation2], %s173
        %s175 = smul.u32 2, %s21
        %p176 = scmp.lt.s32.totalorder %s20, 3
        %s177 = scalar_select %p176, %s20, 3
        %p178 = scmp.lt.s32.totalorder %s175, 1
        %s179 = scalar_select %p178, %s175, 1
        %s180 = smul.addr %s177, 2
        %s181 = sadd.s32 %s179, %s180
        %s182 = smul.addr %s181, 4
        %s183 = scalar_lea.vmem %s0, %s182
        %s184 = smul.u32 2, %s21
        %p185 = scmp.lt.s32.totalorder %s20, 3
        %s186 = scalar_select %p185, %s20, 3
        %s187 = smul.addr %s186, 4
        %s188 = scalar_lea.vmem %s1, %s187
        %s189 = smul.u32 2, %s21
        %v191 = vld [vmem:[%s183] sm:$0xf]
        %v192 = vld [vmem:[%s183 + $0x4] sm:$0xf]
        %v193 = vld [vmem:[%s188] sm:$0xf]
        %v196 = vunpack.c.l.b16 %v191
        %v197 = vunpack.c.l.b16 %v192
        %v198 = vpack.c.b16 %v197, %v196
        %vm199 = vcmask 64512
        %v201 = vsel %vm199, %v198, 0
        %vm203 = vcmask 1043456
        %v205 = vsel %vm203, %v193, 0
        %207 = vmatprep.subr.bf16.mxu0 0
        %208 = vmatpush1.bf16.msra.mxu0 0
        %209 = vmatprep.subr.bf16.mxu0 0
        %210 = vmatpush1.bf16.msra.mxu0 0
        %211 = vmatprep.subr.bf16.mxu0 0
        %212 = vmatpush1.bf16.msra.mxu0 0
        %213 = vmatprep.subr.bf16.mxu0 0
        %214 = vmatpush1.bf16.msra.mxu0 0
        %215 = vmatprep.subr.bf16.mxu0 0
        %216 = vmatpush1.bf16.msra.mxu0 0
        %217 = vmatprep.subr.bf16.mxu0 0
        %218 = vmatpush1.bf16.msra.mxu0 0
        %219 = vmatprep.subr.bf16.mxu0 0
        %220 = vmatpush1.bf16.msra.mxu0 0
        %221 = vmatprep.subr.bf16.mxu0 0
        %222 = vmatpush1.bf16.msra.mxu0 %v205
        %223 = vmatprep.subr.bf16.mxu0 0
        %224 = vmatpush2.bf16.msra.mxu0 0
        %225 = vmatprep.subr.bf16.mxu0 0
        %226 = vmatpush2.bf16.msra.mxu0 0
        %227 = vmatprep.subr.bf16.mxu0 0
        %228 = vmatpush2.bf16.msra.mxu0 0
        %229 = vmatprep.subr.bf16.mxu0 0
        %230 = vmatpush2.bf16.msra.mxu0 0
        %231 = vmatprep.subr.bf16.mxu0 0
        %232 = vmatpush2.bf16.msra.mxu0 0
        %233 = vmatprep.subr.bf16.mxu0 0
        %234 = vmatpush2.bf16.msra.mxu0 0
        %235 = vmatprep.subr.bf16.mxu0 0
        %236 = vmatpush2.bf16.msra.mxu0 0
        %237 = vmatprep.subr.bf16.mxu0 0
        %238 = vmatpush2.bf16.msra.mxu0 0
        %239 = vmatprep.mubr.bf16.mxu0 0
        %240 = vmatmul.mubr.bf16.gmra.mxu0 %v201
        %v241 = vpop.f32.mrf.mxu0
        %v242 = vadd.f32 0.0, %v241
        %v243 = vpop.f32.mrf.mxu0
        %v244 = vpop.f32.mrf.mxu0
        %v245 = vadd.f32 0.0, %v244
        %v246 = vpop.f32.mrf.mxu0
        %247 = vdwg.mxu0
        %v248 = vmul.f32 %v242, 0.35355338
        %v249 = vmul.f32 %v245, 0.35355338
        %vm250 = vcmask 130048
        %v251 = vsel %vm250, %v248, -inf
        %252 = vmax.xlane.f32.xlu0 %v251
        %v253 = vpop.xlane.xlu0 %252
        %v254 = vsel %vm250, %v249, -inf
        %255 = vmax.xlane.f32.xlu0 %v254
        %v256 = vpop.xlane.xlu0 %255
        %v257 = vsub.f32 %v248, %v253
        %v258 = vsub.f32 %v249, %v256
        %v259 = vmul.f32 %v257, 1.442695
        %v260 = vpow.pop %v259
        %v261 = vmul.f32 %v258, 1.442695
        %v262 = vpow.pop %v261
        %v263 = vsel %vm250, %v260, 0.0
        %264 = vadd.xlane.f32.xlu0 %v263
        %v265 = vpop.xlane.xlu0 %264
        %v266 = vsel %vm250, %v262, 0.0
        %267 = vadd.xlane.f32.xlu0 %v266
        %v268 = vpop.xlane.xlu0 %267
        %v269 = vrcp.pop %v265
        %v270 = vrcp.pop %v268
        %v271 = vmul.f32 %v260, %v269
        %v272 = vmul.f32 %v262, %v270
        %v273 = vpack.c.bf16 %v272, %v271
        %v275 = vunpack.c.l.b16 %v273
        %v276 = vunpack.c.h.b16 %v273
        %v277 = vpack.c.b16 %v275, %v275
        %v278 = vpack.c.b16 %v276, %v276
        %vm281 = vcmask 125952
        %282 = vst.msk [vmem:[%s174] sm:$0xf] %vm281, %v277
        %283 = vst.msk [vmem:[%s174 + $0x4] sm:$0xf] %vm281, %v278
        %s284 = sand.u32 %s92, 1
        %s285 = scalar_lea.sflag [#allocation3], %s284
        %s286 = sand.u32 %s92, 1
        %s287 = smul.addr %s286, 8
        %s288 = scalar_lea.vmem [#allocation2], %s287
        // Predicated region
        $region29: #{tpu_custom_call.1} parent=27 // pred_check
          %p289 = pneg %p102
        $region30: #{tpu_custom_call.1} parent=27 // pred_check_branch
          %291 = sbr.rel (%p289) target = $region32
        $region31: #{tpu_custom_call.1} parent=27 // pred_region
          %s292 = smul.u32 2, %s21
          %s294 = ssub.s32 128, 128
          %295 = vsyncadd %s285, %s294
          %s296 = smul.addr %s20, 2
          %s297 = sadd.s32 %s292, %s296
          %s298 = smul.addr %s297, 64
          %s299 = scalar_lea.hbm %s2, %s298
          %s300 = sshll.u32 %s288, 4
          %s301 = int_to_ptr.vmem [resolvable:$true] %s300
          %306 = dma.vmem_to_hbm [thread:$0]  %s301, 128, %s299, %s285, 64, 64, 4
        $region32: #{tpu_custom_call.1} parent=27 // pred_fallthru
          _
      $region28: #{tpu_custom_call.1} parent=5 // pred_fallthru
        _
      %p307 = scmp.le.s32.totalorder 2, %s11
      // Predicated region
      $region33: #{tpu_custom_call.1} parent=5 // pred_check
        %p308 = pneg %p307
      $region34: #{tpu_custom_call.1} parent=5 // pred_check_branch
        %310 = sbr.rel (%p308) target = $region36
      $region35: #{tpu_custom_call.1} parent=5 // pred_region
        %s311 = ssub.s32 %s11, 2
        // Predicated region
        $region37: #{tpu_custom_call.1} parent=35 // pred_check
          %p312 = pneg %p108
        $region38: #{tpu_custom_call.1} parent=35 // pred_check_branch
          %314 = sbr.rel (%p312) target = $region40
        $region39: #{tpu_custom_call.1} parent=35 // pred_region
          %s315 = sand.u32 %s93, 1
          %s316 = scalar_lea.sflag [#allocation3], %s315
          %s317 = sand.u32 %s93, 1
          %s318 = smul.addr %s317, 8
          %s319 = scalar_lea.vmem [#allocation2], %s318
          %320 = dma.done %s316, 128
        $region40: #{tpu_custom_call.1} parent=35 // pred_fallthru
          _
      $region36: #{tpu_custom_call.1} parent=5 // pred_fallthru
        _
    $region6: #{tpu_custom_call.1} parent=1 // loop_footer
      %s15 = sadd.s32 1, %s11
    $region7: #{tpu_custom_call.1} parent=1 // loop_footer_branch
      %10 = sbr.rel target = $region3
    $region8: #{tpu_custom_call.1} parent=1 // loop_exit
      _
    %321 = vsyncpa [#allocation3], 1
    %s322 = scalar_lea.sflag [#allocation3], 1
    %323 = vsyncpa %s322, 1

</llo_original>
